<compile_context>
chip_gen: v5e
topology: v5e:2x2
jax: 0.10.0
libtpu: 0.0.40
codegen_flags: <defaults>
</compile_context>

<pallas_src>
import functools

import jax
import jax.numpy as jnp
from jax.experimental import pallas as pl
from jax.experimental.pallas import tpu as pltpu

LANES = 128
DEFAULT_BLOCK_ROWS = 2048


def _sublane_align(dtype):
    itemsize = jnp.dtype(dtype).itemsize
    if itemsize == 1:
        return 32
    if itemsize == 2:
        return 16
    return 8


def _edge_loss_partials_kernel(x_ref, t_ref, out_ref, *, rows, block_rows,
                               need_mask):
    """Per-block partial sums: (pos_count, neg_count, bce_pos, bce_neg) per lane.

    out_ref: (1, 4, 128) f32 — per-lane partials for this grid block.
    Grid axis is 'parallel' (no cross-block state), so megacore can shard it.
    """
    i = pl.program_id(0)

    x = x_ref[...].astype(jnp.float32)
    t = t_ref[...].astype(jnp.float32)

    if need_mask:
        # Rows past `rows` in the last (non-divisible) block contain garbage
        # from the VMEM buffer; neutralize them (x -> 0, t -> 2 == ignore).
        row_ids = jax.lax.broadcasted_iota(jnp.int32, x.shape, 0) + i * block_rows
        valid = row_ids < rows
        x = jnp.where(valid, x, 0.0)
        t = jnp.where(valid, t, 2.0)

    pos_f = (t == 1.0).astype(jnp.float32)
    neg_f = (t == 0.0).astype(jnp.float32)

    # Numerically-stable unweighted BCE-with-logits:
    #   max(x, 0) - x * t + log(1 + exp(-|x|))
    # TODO(synk): on v6e/v7x the two transcendentals could run in bf16 on the
    # EUP if it ever becomes the binding unit after the bf16/int8 diet.
    bce = jnp.maximum(x, 0.0) - x * t + jnp.log1p(jnp.exp(-jnp.abs(x)))

    pos_lane = jnp.sum(pos_f, axis=0, keepdims=True)          # (1, 128)
    neg_lane = jnp.sum(neg_f, axis=0, keepdims=True)
    bpos_lane = jnp.sum(bce * pos_f, axis=0, keepdims=True)
    bneg_lane = jnp.sum(bce * neg_f, axis=0, keepdims=True)

    out_ref[...] = jnp.concatenate(
        [pos_lane, neg_lane, bpos_lane, bneg_lane], axis=0)[None]   # (1,4,128)


def edge_loss_single(logits, target, block_rows=DEFAULT_BLOCK_ROWS):
    """EdgeLoss.cal(input, target) for NCHW tensors of identical shape."""
    assert logits.shape == target.shape
    n_elems = int(logits.size)

    rows = -(-n_elems // LANES)

    # Lane-dense reshape.  When n_elems % 128 == 0 (typical NCHW image sizes)
    # this is a free bitcast — no HBM copy, no dtype upcast.
    x_flat = logits.reshape(-1)
    t_flat = target.reshape(-1)
    pad = rows * LANES - n_elems
    if pad:
        # Rare ragged lane-tail (< 128 elems): pad logits with 0 and targets
        # with 2 ("ignore" class), so padding never affects the loss.
        x_flat = jnp.pad(x_flat, (0, pad))
        t_flat = jnp.pad(t_flat, (0, pad), constant_values=2)
    x2d = x_flat.reshape(rows, LANES)
    t2d = t_flat.reshape(rows, LANES)

    if rows <= block_rows:
        block_rows = rows                       # single full-extent block
    else:
        align = max(_sublane_align(x2d.dtype), _sublane_align(t2d.dtype))
        block_rows = max(align, (block_rows // align) * align)

    grid_rows = -(-rows // block_rows)
    need_mask = (rows % block_rows) != 0        # row-tail of the last block

    kernel = functools.partial(
        _edge_loss_partials_kernel,
        rows=rows, block_rows=block_rows, need_mask=need_mask)

    bytes_accessed = (x2d.size * x2d.dtype.itemsize
                      + t2d.size * t2d.dtype.itemsize
                      + grid_rows * 4 * LANES * 4)

    partials = pl.pallas_call(
        kernel,
        out_shape=jax.ShapeDtypeStruct((grid_rows, 4, LANES), jnp.float32),
        grid_spec=pltpu.PrefetchScalarGridSpec(
            num_scalar_prefetch=0,
            grid=(grid_rows,),
            in_specs=[
                pl.BlockSpec((block_rows, LANES), lambda i: (i, 0)),
                pl.BlockSpec((block_rows, LANES), lambda i: (i, 0)),
            ],
            out_specs=pl.BlockSpec((1, 4, LANES), lambda i: (i, 0, 0)),
        ),
        compiler_params=pltpu.CompilerParams(
            dimension_semantics=("parallel",)),   # blocks independent -> megacore
        cost_estimate=pl.CostEstimate(
            flops=12 * n_elems,
            transcendentals=2 * n_elems,
            bytes_accessed=int(bytes_accessed)),
    )(x2d, t2d)

    # Tiny final combine in plain JAX (4 scalars).
    sums = jnp.sum(partials, axis=(0, 2))        # (4,)
    pos_num, neg_num = sums[0], sums[1]
    bce_pos, bce_neg = sums[2], sums[3]
    # Matches PyTorch: NaN if pos_num + neg_num == 0 (all pixels ignored).
    return (neg_num * bce_pos + pos_num * bce_neg) / ((pos_num + neg_num)
                                                      * n_elems)


def _nearest_resize_nchw(x, out_hw):
    """F.interpolate(x, size=out_hw, mode='nearest') for NCHW (glue, plain JAX).

    PyTorch nearest: src_idx = floor(dst_idx * in_size / out_size).
    """
    _, _, h, w = x.shape
    oh, ow = out_hw
    rows = (jnp.arange(oh) * h) // oh
    cols = (jnp.arange(ow) * w) // ow
    return x[:, :, rows[:, None], cols[None, :]]


def edge_loss(inputs, target):
    """EdgeLoss.forward: `inputs` may be a single NCHW array or a list of them."""
    if isinstance(inputs, (list, tuple)):
        loss = jnp.float32(0.0)
        for inp in inputs:
            new_target = _nearest_resize_nchw(target, inp.shape[2:])
            loss = loss + edge_loss_single(inp, new_target)
        return loss
    return edge_loss_single(inputs, target)


def _edge_loss_reference(logits, target):
    """Pure-JAX reference for correctness check."""
    x = logits.reshape(-1).astype(jnp.float32)
    t = target.reshape(-1).astype(jnp.float32)
    pos = t == 1.0
    neg = t == 0.0
    pos_num = jnp.sum(pos.astype(jnp.float32))
    neg_num = jnp.sum(neg.astype(jnp.float32))
    s = pos_num + neg_num
    w = jnp.where(pos, neg_num / s, jnp.where(neg, pos_num / s, 0.0))
    bce = jnp.maximum(x, 0.0) - x * t + jnp.log1p(jnp.exp(-jnp.abs(x)))
    return jnp.mean(w * bce)


if __name__ == "__main__":
    key = jax.random.PRNGKey(0)
    k1, k2, k3, k4, k5 = jax.random.split(key, 5)

    # --- Test 1: f32 inputs, n % 128 == 0 (pure-reshape, zero-copy path). ---
    N, C, H, W = 2, 4, 16, 16
    logits = jax.random.normal(k1, (N, C, H, W), dtype=jnp.float32)
    # Target values in {0, 1, 2}: positives, negatives, and ignored pixels.
    target = jax.random.randint(k2, (N, C, H, W), 0, 3).astype(jnp.float32)

    loss = jax.block_until_ready(edge_loss(logits, target))
    ref = _edge_loss_reference(logits, target)
    assert jnp.allclose(loss, ref, rtol=1e-5, atol=1e-6), (loss, ref)

    # --- Test 2: multi-scale list path (nearest-resize glue + same kernel). ---
    logits_half = jax.random.normal(k3, (N, C, H // 2, W // 2), dtype=jnp.float32)
    loss_list = jax.block_until_ready(edge_loss([logits, logits_half], target))
    ref_list = (_edge_loss_reference(logits, target)
                + _edge_loss_reference(
                    logits_half, _nearest_resize_nchw(target, (H // 2, W // 2))))
    assert jnp.allclose(loss_list, ref_list, rtol=1e-5, atol=1e-6), (
        loss_list, ref_list)

    # --- Test 3: low-precision storage (bf16 logits, int8 targets). ---
    logits3 = jax.random.normal(k4, (2, 4, 32, 32), dtype=jnp.float32)
    target3 = jax.random.randint(k5, (2, 4, 32, 32), 0, 3)
    loss_lp = jax.block_until_ready(
        edge_loss(logits3.astype(jnp.bfloat16), target3.astype(jnp.int8)))
    ref_lp = _edge_loss_reference(
        logits3.astype(jnp.bfloat16).astype(jnp.float32),
        target3.astype(jnp.float32))
    assert jnp.allclose(loss_lp, ref_lp, rtol=1e-5, atol=1e-6), (loss_lp, ref_lp)

    # --- Test 4: ragged size + multi-block grid with in-kernel tail masking. ---
    logits_r = jax.random.normal(k4, (1, 3, 30, 30), dtype=jnp.float32)
    target_r = jax.random.randint(k2, (1, 3, 30, 30), 0, 3).astype(jnp.float32)
    loss_r = jax.block_until_ready(
        edge_loss_single(logits_r, target_r, block_rows=8))
    ref_r = _edge_loss_reference(logits_r, target_r)
    assert jnp.allclose(loss_r, ref_r, rtol=1e-5, atol=1e-6), (loss_r, ref_r)

    print("KERNEL_OK")
</pallas_src>

<mosaic_0001>
module attributes {stable_mosaic.version = 11 : i64} {
  func.func @_edge_loss_partials_kernel(%arg0: i32, %arg1: memref<16x128xf32, #tpu.memory_space<vmem>>, %arg2: memref<16x128xf32, #tpu.memory_space<vmem>>, %arg3: memref<1x4x128xf32, #tpu.memory_space<vmem>>) attributes {dimension_semantics = [#tpu.dimension_semantics<parallel>], iteration_bounds = array<i64: 1>, scalar_prefetch = 0 : i64, scratch_operands = 0 : i64, tpu.core_type = #tpu.core_type<tc>, window_params = [{transform_indices = @transform_0, window_bounds = array<i64: 16, 128>}, {transform_indices = @transform_1, window_bounds = array<i64: 16, 128>}, {transform_indices = @transform_2, window_bounds = array<i64: 1, 4, 128>}]} {
    %c0 = arith.constant 0 : index
    %c0_0 = arith.constant 0 : index
    %0 = vector.load %arg1[%c0, %c0_0] : memref<16x128xf32, #tpu.memory_space<vmem>>, vector<16x128xf32>
    %c0_1 = arith.constant 0 : index
    %c0_2 = arith.constant 0 : index
    %1 = vector.load %arg2[%c0_1, %c0_2] : memref<16x128xf32, #tpu.memory_space<vmem>>, vector<16x128xf32>
    %cst = arith.constant 1.000000e+00 : f32
    %2 = vector.broadcast %cst : f32 to vector<16x128xf32>
    %3 = arith.cmpf oeq, %1, %2 : vector<16x128xf32>
    %4 = arith.extui %3 : vector<16x128xi1> to vector<16x128xi32>
    %5 = arith.sitofp %4 : vector<16x128xi32> to vector<16x128xf32>
    %cst_3 = arith.constant 0.000000e+00 : f32
    %6 = vector.broadcast %cst_3 : f32 to vector<16x128xf32>
    %7 = arith.cmpf oeq, %1, %6 : vector<16x128xf32>
    %8 = arith.extui %7 : vector<16x128xi1> to vector<16x128xi32>
    %9 = arith.sitofp %8 : vector<16x128xi32> to vector<16x128xf32>
    %cst_4 = arith.constant 0.000000e+00 : f32
    %10 = vector.broadcast %cst_4 : f32 to vector<16x128xf32>
    %11 = arith.maximumf %0, %10 : vector<16x128xf32>
    %12 = arith.mulf %0, %1 : vector<16x128xf32>
    %13 = arith.subf %11, %12 : vector<16x128xf32>
    %14 = math.absf %0 : vector<16x128xf32>
    %cst_5 = arith.constant 0.000000e+00 : f32
    %15 = vector.broadcast %cst_5 : f32 to vector<16x128xf32>
    %16 = arith.subf %15, %14 : vector<16x128xf32>
    %17 = math.exp %16 : vector<16x128xf32>
    %18 = math.log1p %17 : vector<16x128xf32>
    %19 = arith.addf %13, %18 : vector<16x128xf32>
    %cst_6 = arith.constant dense<0.000000e+00> : vector<128xf32>
    %20 = vector.multi_reduction <add>, %5, %cst_6 [0] : vector<16x128xf32> to vector<128xf32>
    %21 = vector.shape_cast %20 : vector<128xf32> to vector<1x128xf32>
    %cst_7 = arith.constant dense<0.000000e+00> : vector<128xf32>
    %22 = vector.multi_reduction <add>, %9, %cst_7 [0] : vector<16x128xf32> to vector<128xf32>
    %23 = vector.shape_cast %22 : vector<128xf32> to vector<1x128xf32>
    %24 = arith.mulf %19, %5 : vector<16x128xf32>
    %cst_8 = arith.constant dense<0.000000e+00> : vector<128xf32>
    %25 = vector.multi_reduction <add>, %24, %cst_8 [0] : vector<16x128xf32> to vector<128xf32>
    %26 = vector.shape_cast %25 : vector<128xf32> to vector<1x128xf32>
    %27 = arith.mulf %19, %9 : vector<16x128xf32>
    %cst_9 = arith.constant dense<0.000000e+00> : vector<128xf32>
    %28 = vector.multi_reduction <add>, %27, %cst_9 [0] : vector<16x128xf32> to vector<128xf32>
    %29 = vector.shape_cast %28 : vector<128xf32> to vector<1x128xf32>
    %30 = tpu.concatenate %21, %23, %26, %29 in 0 : vector<1x128xf32>, vector<1x128xf32>, vector<1x128xf32>, vector<1x128xf32> -> vector<4x128xf32>
    %31 = vector.shape_cast %30 : vector<4x128xf32> to vector<1x4x128xf32>
    %c0_10 = arith.constant 0 : index
    %c0_11 = arith.constant 0 : index
    %c0_12 = arith.constant 0 : index
    %32 = vector.load %arg3[%c0_10, %c0_11, %c0_12] : memref<1x4x128xf32, #tpu.memory_space<vmem>>, vector<1x4x128xf32>
    tpu.vector_store %arg3[%c0_10, %c0_11, %c0_12], %31 {strides = array<i32>} : memref<1x4x128xf32, #tpu.memory_space<vmem>>, vector<1x4x128xf32>,
    return
  }
  func.func @transform_0(%arg0: i32) -> (i32, i32) {
    %c0_i32 = arith.constant 0 : i32
    %c0_i32_0 = arith.constant 0 : i32
    return %arg0, %c0_i32 : i32, i32
  }
  func.func @transform_1(%arg0: i32) -> (i32, i32) {
    %c0_i32 = arith.constant 0 : i32
    %c0_i32_0 = arith.constant 0 : i32
    return %arg0, %c0_i32 : i32, i32
  }
  func.func @transform_2(%arg0: i32) -> (i32, i32, i32) {
    %c0_i32 = arith.constant 0 : i32
    %c0_i32_0 = arith.constant 0 : i32
    %c0_i32_1 = arith.constant 0 : i32
    return %arg0, %c0_i32, %c0_i32_0 : i32, i32, i32
  }
}

</mosaic_0001>

<llo_original>
// kernel: tpu_custom_call.1
$region0: #{tpu_custom_call.1}
  #allocation0 [shape = 'u32[]', space=smem, size = 0x4, offset = 0x4, fixed_abs, tag = 'smem constant byte address 0x4 - core index']
  #allocation1 [shape = 'u32[72,128]{1,0:T(1,128)}', space=vmem, size = 0x9000, scoped, tag = 'internal scratch']
  %s0 = inlined_call_operand.hbm [shape: f32[16,128], index: 0, kind: input, shape index: {}]
  %s1 = inlined_call_operand.hbm [shape: f32[16,128], index: 1, kind: input, shape index: {}]
  %s2 = inlined_call_operand.hbm [shape: f32[1,4,128], index: 2, kind: output, shape index: {}]
  %s3 = sld [smem:[#allocation0]]
  $region26: #{tpu_custom_call.1} parent=0
    _
  %s5 = ssub.s32 1, %s3
  %s6 = scalar_select 0, %s5, %s3
  $region1: #{tpu_custom_call.1} parent=0
    #allocation2 [shape = 'u8[8192]{0}', space=vmem, size = 0x2000, scoped, tag = 'input window, operand 0, single buffered']
    #allocation3 [shape = 's32[1]{0}', space=sflag, size = 0x4, scoped, tag = 'scoped memory for tpu_custom_call.1']
    #allocation4 [shape = 's32[1]{0}', space=sflag, size = 0x4, scoped, tag = 'scoped memory for tpu_custom_call.1']
    #allocation5 [shape = 'u8[8192]{0}', space=vmem, size = 0x2000, scoped, tag = 'input window, operand 1, single buffered']
    #allocation6 [shape = 's32[1]{0}', space=sflag, size = 0x4, scoped, tag = 'scoped memory for tpu_custom_call.1']
    #allocation7 [shape = 'u8[2048]{0}', space=vmem, size = 0x800, scoped, tag = 'output window, operand 0, single buffered']
    %7 = vsyncpa [#allocation3], 0
    %8 = vsyncpa [#allocation6], 0
    %9 = vsyncpa [#allocation4], 0
    // Predicated region
    $region2: #{tpu_custom_call.1} parent=1 // pred_check
      _
    $region3: #{tpu_custom_call.1} parent=1 // pred_check_branch
      %11 = sbr.rel (0) target = $region5
    $region4: #{tpu_custom_call.1} parent=1 // pred_region
      %13 = vsyncadd [#allocation3], 0
      %s14 = sshll.u32 %s0, 4
      %s15 = int_to_ptr.hbm [resolvable:$true] %s14
      %s16 = sshll.u32 [#allocation2], 4
      %s17 = int_to_ptr.vmem [resolvable:$true] %s16
      %22 = dma.hbm_to_vmem [thread:$0]  %s15, 256, %s17, [#allocation3], 128, 128, 8
    $region5: #{tpu_custom_call.1} parent=1 // pred_fallthru
      _
    // Predicated region
    $region6: #{tpu_custom_call.1} parent=1 // pred_check
      _
    $region7: #{tpu_custom_call.1} parent=1 // pred_check_branch
      %24 = sbr.rel (0) target = $region9
    $region8: #{tpu_custom_call.1} parent=1 // pred_region
      %26 = vsyncadd [#allocation6], 0
      %s27 = sshll.u32 %s1, 4
      %s28 = int_to_ptr.hbm [resolvable:$true] %s27
      %s29 = sshll.u32 [#allocation5], 4
      %s30 = int_to_ptr.vmem [resolvable:$true] %s29
      %35 = dma.hbm_to_vmem [thread:$0]  %s28, 256, %s30, [#allocation6], 128, 128, 8
    $region9: #{tpu_custom_call.1} parent=1 // pred_fallthru
      _
    // Predicated region
    $region10: #{tpu_custom_call.1} parent=1 // pred_check
      _
    $region11: #{tpu_custom_call.1} parent=1 // pred_check_branch
      %37 = sbr.rel (0) target = $region13
    $region12: #{tpu_custom_call.1} parent=1 // pred_region
      %39 = dma.done [#allocation3], 256
    $region13: #{tpu_custom_call.1} parent=1 // pred_fallthru
      _
    // Predicated region
    $region14: #{tpu_custom_call.1} parent=1 // pred_check
      _
    $region15: #{tpu_custom_call.1} parent=1 // pred_check_branch
      %41 = sbr.rel (0) target = $region17
    $region16: #{tpu_custom_call.1} parent=1 // pred_region
      %43 = dma.done [#allocation6], 256
    $region17: #{tpu_custom_call.1} parent=1 // pred_fallthru
      _
    %v44 = vld [vmem:[#allocation2] sm:$0xff]
    %v45 = vld [vmem:[#allocation2 + $0x8] sm:$0xff]
    %v46 = vld [vmem:[#allocation5] sm:$0xff]
    %v47 = vld [vmem:[#allocation5 + $0x8] sm:$0xff]
    %vm48 = vcmp.eq.f32.partialorder %v46, 1.0
    %vm49 = vcmp.eq.f32.partialorder %v47, 1.0
    %v50 = vsel %vm48, 1, 0
    %v51 = vsel %vm49, 1, 0
    %v52 = vcvt.s32.f32 %v50
    %v53 = vcvt.s32.f32 %v51
    %vm54 = vcmp.eq.f32.partialorder %v46, 0.0
    %vm55 = vcmp.eq.f32.partialorder %v47, 0.0
    %v56 = vsel %vm54, 1, 0
    %v57 = vsel %vm55, 1, 0
    %v58 = vcvt.s32.f32 %v56
    %v59 = vcvt.s32.f32 %v57
    %v60 = vmax.f32 %v44, 0.0
    %v61 = vmax.f32 %v45, 0.0
    %v62 = vmul.f32 %v44, %v46
    %v63 = vmul.f32 %v45, %v47
    %v64 = vsub.f32 %v60, %v62
    %v65 = vsub.f32 %v61, %v63
    %v66 = vand.u32 2147483647, %v44
    %v67 = vand.u32 2147483647, %v45
    %v68 = vsub.f32 0.0, %v66
    %v69 = vsub.f32 0.0, %v67
    %v70 = vmul.f32 %v68, 1.442695
    %v71 = vpow.pop %v70
    %v72 = vmul.f32 %v69, 1.442695
    %v73 = vpow.pop %v72
    %v74 = vadd.f32 %v71, 1.0
    %v75 = vlog2.pop %v74
    %v76 = vmul.f32 %v75, 0.6931472
    %v77 = vmul.f32 -0.5, %v71
    %v78 = vadd.f32 %v77, 1.0
    %v79 = vmul.f32 %v78, %v71
    %v80 = vand.u32 2147483647, %v71
    %vm81 = vcmp.lt.f32.partialorder %v80, 0.0004427343
    %v82 = vsel %vm81, %v79, %v76
    %v83 = vadd.f32 %v73, 1.0
    %v84 = vlog2.pop %v83
    %v85 = vmul.f32 %v84, 0.6931472
    %v86 = vmul.f32 -0.5, %v73
    %v87 = vadd.f32 %v86, 1.0
    %v88 = vmul.f32 %v87, %v73
    %v89 = vand.u32 2147483647, %v73
    %vm90 = vcmp.lt.f32.partialorder %v89, 0.0004427343
    %v91 = vsel %vm90, %v88, %v85
    %v92 = vadd.f32 %v64, %v82
    %v93 = vadd.f32 %v65, %v91
    %v94 = vadd.f32 %v52, %v53
    %v95 = vrot.slane %v94, 4
    %v96 = vadd.f32 %v94, %v95
    %v97 = vrot.slane %v96, 2
    %v98 = vadd.f32 %v96, %v97
    %v99 = vrot.slane %v98, 1
    %v100 = vadd.f32 %v98, %v99
    %v101 = vadd.f32 %v58, %v59
    %v102 = vrot.slane %v101, 4
    %v103 = vadd.f32 %v101, %v102
    %v104 = vrot.slane %v103, 2
    %v105 = vadd.f32 %v103, %v104
    %v106 = vrot.slane %v105, 1
    %v107 = vadd.f32 %v105, %v106
    %v108 = vmul.f32 %v92, %v52
    %v109 = vmul.f32 %v93, %v53
    %v110 = vadd.f32 %v108, %v109
    %v111 = vrot.slane %v110, 4
    %v112 = vadd.f32 %v110, %v111
    %v113 = vrot.slane %v112, 2
    %v114 = vadd.f32 %v112, %v113
    %v115 = vrot.slane %v114, 1
    %v116 = vadd.f32 %v114, %v115
    %v117 = vmul.f32 %v92, %v58
    %v118 = vmul.f32 %v93, %v59
    %v119 = vadd.f32 %v117, %v118
    %v120 = vrot.slane %v119, 4
    %v121 = vadd.f32 %v119, %v120
    %v122 = vrot.slane %v121, 2
    %v123 = vadd.f32 %v121, %v122
    %v124 = vrot.slane %v123, 1
    %v125 = vadd.f32 %v123, %v124
    %vm126 = vcmask 1040384
    %v127 = vsel %vm126, %v100, %v107
    %vm128 = vcmask 1041408
    %v129 = vsel %vm128, %v127, %v116
    %vm130 = vcmask 1042432
    %v131 = vsel %vm130, %v129, %v125
    %132 = vst [vmem:[#allocation7] sm:$0xf] %v131
    // Predicated region
    $region18: #{tpu_custom_call.1} parent=1 // pred_check
      _
    $region19: #{tpu_custom_call.1} parent=1 // pred_check_branch
      %134 = sbr.rel (0) target = $region21
    $region20: #{tpu_custom_call.1} parent=1 // pred_region
      %136 = vsyncadd [#allocation4], 0
      %s138 = sshll.u32 [#allocation7], 4
      %s139 = int_to_ptr.vmem [resolvable:$true] %s138
      %s140 = sshll.u32 %s2, 4
      %s141 = int_to_ptr.hbm [resolvable:$true] %s140
      %143 = dma.vmem_to_hbm [thread:$0]  %s139, 64, %s141, [#allocation4]
    $region21: #{tpu_custom_call.1} parent=1 // pred_fallthru
      _
    // Predicated region
    $region22: #{tpu_custom_call.1} parent=1 // pred_check
      _
    $region23: #{tpu_custom_call.1} parent=1 // pred_check_branch
      %145 = sbr.rel (0) target = $region25
    $region24: #{tpu_custom_call.1} parent=1 // pred_region
      %147 = dma.done [#allocation4], 64
    $region25: #{tpu_custom_call.1} parent=1 // pred_fallthru
      _
    %148 = vsyncpa [#allocation3], 1
    %149 = vsyncpa [#allocation6], 1
    %150 = vsyncpa [#allocation4], 1

</llo_original>
